<compile_context>
chip_gen: v6e
topology: v6e:2x2x1
jax: 0.10.0
libtpu: 0.0.40
codegen_flags: <defaults>
</compile_context>

<pallas_src>
import numpy as np
import jax
import jax.numpy as jnp
from jax.experimental import pallas as pl
from jax.experimental.pallas import tpu as pltpu

VOL = 22      # vol_size  -> seq uses [..., :22], msa input channels = 2*22
NBINS = 33    # 24blocks PE embedding rows (clip(|di-dj|,0,32) -> 0..32)
DIST_C = 15   # recycle_dist channels
EPS = 1e-5    # LayerNorm eps (PyTorch default)


# ---------------- VMEM budgeting helpers ----------------------------------- #
def _round_up(x, m):
    return (x + m - 1) // m * m


def _lane_pad(c):
    return max(_round_up(c, 128), 128)


def _device_vmem_limit():
    """Scoped-VMEM limit per generation (leave headroom below physical VMEM)."""
    kind = ""
    try:
        kind = jax.devices()[0].device_kind.lower()
    except Exception:
        pass
    if "v7" in kind:
        return 48 * 1024 * 1024           # v7x: 64 MiB per TensorCore
    if "v2" in kind or "v3" in kind:
        return 12 * 1024 * 1024           # old parts: 16 MiB
    return 96 * 1024 * 1024               # v4/v5e/v5p/v6e: 128 MiB


def _msa_row_bytes(L, Cm):
    """VMEM bytes per MSA-depth row of a kernel-A tile (lane-padded, x2 bufs)."""
    Cmp = _lane_pad(Cm)
    by = 2 * L * 128 * 4          # msa chunk input (44 -> 128 lanes), double-buffered
    by += 2 * L * Cmp * 4         # output chunk, double-buffered
    by += 2 * L * Cmp * 4         # in-kernel f32 intermediates
    return by


def _msa_fixed_bytes(L, Cm):
    Cmp = _lane_pad(Cm)
    by = 2 * L * 128 * 4          # seq block (constant index, still buffered)
    by += 2 * L * Cmp * 4         # recycle_query block
    by += 2 * 1024 * 1024         # weights / biases / slack
    return by


def _pair_row_bytes(L, T, Cp, Ck):
    """VMEM bytes per pair-row of a fused-kernel tile (lane-padded, x2 bufs)."""
    Cpp, Ckp = _lane_pad(Cp), _lane_pad(Ck)
    Lp = _lane_pad(L)
    by = 2 * 128 * 4              # seq row tile (22 -> 128 lanes)
    by += 2 * Lp * 4              # seqsep (int32)
    by += 2 * L * Cpp * 4         # recycle_rr
    by += 2 * L * 128 * 4         # recycle_dist (15 -> 128 lanes)
    by += 2 * T * L * Ckp * 4     # template (f32 in, cast to bf16 in-kernel)
    by += 2 * L * Cpp * 4         # output
    by += T * L * Ckp * 16        # k/v/prod bf16 + logits/exp f32 intermediates
    by += 6 * L * Cpp * 4         # lr / pe_dist / ln / q2 / attn-out f32 temporaries
    return by


def _pair_fixed_bytes(L):
    by = 2 * max(_round_up(L, 8), 8) * 128 * 4   # full-length seq for r projection
    by += 2 * 1024 * 1024                        # weights / biases / slack
    return by


def _pick_chunk(total, row_bytes, fixed_bytes, budget):
    """Largest divisor of `total` whose tile fits the budget."""
    for d in range(total, 0, -1):
        if total % d == 0 and fixed_bytes + d * row_bytes <= budget:
            return d
    return 1


def _pick_row_tile(L, row_bytes, fixed_bytes, budget):
    """Largest TL dividing L (multiple of 8, or == L) fitting the budget."""
    cands = [d for d in range(L, 0, -1) if L % d == 0 and (d % 8 == 0 or d == L)]
    for d in cands:
        if fixed_bytes + d * row_bytes <= budget:
            return d
    return cands[-1]


# ---------------- Kernel A: MSA embedding (grid = (N, D//Dc)) -------------- #
def msa_kernel(msa_ref, seq_ref, rq_ref, Wm, bm, Wq, bq, g, b, o_ref):
    Dc, L = msa_ref.shape[1], msa_ref.shape[2]
    Cm = o_ref.shape[-1]
    bf16 = jnp.bfloat16

    # One (Dc*L, 2*VOL) x (2*VOL, Cm) matmul per D-chunk; bf16 in, f32 acc.
    x = msa_ref[0].astype(bf16).reshape(Dc * L, 2 * VOL)
    emb = jnp.dot(x, Wm[...], preferred_element_type=jnp.float32) + bm[...]
    qemb = jnp.dot(seq_ref[0].astype(bf16), Wq[...],
                   preferred_element_type=jnp.float32) + bq[...]
    o_ref[0] = emb.reshape(Dc, L, Cm) + qemb[None]

    # LayerNorm(recycle_query) added to global MSA row d == 0 only.
    @pl.when(pl.program_id(1) == 0)
    def _():
        rq = rq_ref[0]                                  # (L, Cm) f32
        mu = jnp.mean(rq, axis=-1, keepdims=True)
        var = jnp.mean((rq - mu) ** 2, axis=-1, keepdims=True)
        ln = (rq - mu) * jax.lax.rsqrt(var + EPS) * g[...] + b[...]
        o_ref[0, 0] = o_ref[0, 0] + ln


# ---------------- Kernel B: fused pair embedding + PointwiseAttn ----------- #
# grid = (N, L // TL); residual rr_pre never leaves VMEM.
def pair_kernel(seqt_ref, seqf_ref, sep_ref, rr_ref, dist_ref, kv_ref,
                Wl, bl, Wr, br, Wpd, bd, g, b,
                WQ, WKV, WO, bO, GS, o_ref):
    TL, L = sep_ref.shape[1], sep_ref.shape[2]
    Cp = o_ref.shape[-1]
    T, Ck = kv_ref.shape[1], kv_ref.shape[4]
    P = TL * L
    bf16 = jnp.bfloat16

    # ---- pair (rr_pre) embedding ----
    # l for this row tile, r over the full length -> outer sum (TL, L, Cp)
    l = jnp.dot(seqt_ref[0].astype(bf16), Wl[...],
                preferred_element_type=jnp.float32) + bl[...]       # (TL, Cp)
    r = jnp.dot(seqf_ref[0].astype(bf16), Wr[...],
                preferred_element_type=jnp.float32) + br[...]       # (L, Cp)
    lr = l[:, None, :] + r[None, :, :]

    # fused positional-embedding gather + recycle_dist projection:
    #   [one-hot(seqsep) | recycle_dist] @ [PE ; W_dist]  ->  (P, Cp)
    sep = sep_ref[0].reshape(P, 1)
    iota = jax.lax.broadcasted_iota(jnp.int32, (P, NBINS), 1)
    onehot = (iota == sep).astype(bf16)                             # (P, NBINS)
    dist = dist_ref[0].astype(bf16).reshape(P, DIST_C)              # (P, DIST_C)
    pd = jnp.concatenate([onehot, dist], axis=-1)                   # (P, 48)
    pe_dist = (jnp.dot(pd, Wpd[...], preferred_element_type=jnp.float32)
               + bd[...]).reshape(TL, L, Cp)

    # LayerNorm(recycle_rr) in f32
    rr = rr_ref[0]                                                  # (TL, L, Cp)
    mu = jnp.mean(rr, axis=-1, keepdims=True)
    var = jnp.mean((rr - mu) ** 2, axis=-1, keepdims=True)
    ln = (rr - mu) * jax.lax.rsqrt(var + EPS) * g[...] + b[...]

    q2 = (lr + pe_dist + ln).reshape(P, Cp)                         # rr_pre, f32

    # ---- PointwiseAttn + residual ----
    # Q projection: 1/sqrt(ppg) scale is folded into WQ in the wrapper.
    qp = jnp.dot(q2.astype(bf16), WQ[...],
                 preferred_element_type=jnp.float32).astype(bf16)   # (P, Ck)

    # fused K/V projection: (T*P, Ck) x (Ck, 2*Ck); keep k/v in bf16.
    kvf = kv_ref[0].astype(bf16).reshape(T * P, Ck)                 # cast after DMA
    kv = jnp.dot(kvf, WKV[...],
                 preferred_element_type=jnp.float32).astype(bf16)   # (T*P, 2*Ck)
    k = kv[:, :Ck].reshape(T, P, Ck)
    v = kv[:, Ck:].reshape(T, P, Ck)

    # grouped logits, broadcast over ppg channels in one matmul:
    #   GS = SEL @ SEL.T (Ck x Ck), so prod @ GS already carries the group sums.
    prod = qp[None] * k                                             # (T, P, Ck) bf16
    logits = jnp.dot(prod.reshape(T * P, Ck), GS[...],
                     preferred_element_type=jnp.float32).reshape(T, P, Ck)

    # softmax over templates (axis 0); EUP approx reciprocal for the normalizer
    m = jnp.max(logits, axis=0, keepdims=True)
    e = jnp.exp(logits - m)
    attn = e * pl.reciprocal(jnp.sum(e, axis=0, keepdims=True), approx=True)

    x = jnp.sum(attn * v, axis=0)                                   # (P, Ck) f32
    out = jnp.dot(x.astype(bf16), WO[...],
                  preferred_element_type=jnp.float32) + bO[...]

    o_ref[0] = (q2 + out).reshape(TL, L, Cp)                        # residual add


# ---------------- Wrapper -------------------------------------------------- #
def tr_embedding_forward(params, msa_matrix, template, idx,
                         recycle_query, recycle_rr, recycle_dist, groups=4):
    N, D, L, _ = msa_matrix.shape
    T = template.shape[1]
    Cm = params['W_msa'].shape[1]
    Cp = params['W_l'].shape[1]
    Ck = params['W_K'].shape[0]
    ppg = Ck // groups
    f32, bf16 = jnp.float32, jnp.bfloat16

    vmem_limit = _device_vmem_limit()
    budget = (vmem_limit * 4) // 5                   # tile-picking headroom

    recycle_dist = recycle_dist.astype(recycle_rr.dtype)
    seq = msa_matrix[:, 0, :, :VOL]
    # 24blocks model: seqsep = clip(|idx_i - idx_j|, 0, 32)
    seqsep = jnp.clip(jnp.abs(idx[:, :, None] - idx[:, None, :]), 0, 32).astype(jnp.int32)

    r2 = lambda v: v.reshape(1, -1).astype(f32)      # biases / LN params -> (1, C) f32
    wb = lambda w: w.astype(bf16)                    # matmul weights -> bf16

    # ---- Kernel A: MSA embedding, D-chunk from a VMEM budget ----
    Dc = _pick_chunk(D, _msa_row_bytes(L, Cm), _msa_fixed_bytes(L, Cm),
                     min(budget, 32 * 1024 * 1024))
    msa_out = pl.pallas_call(
        msa_kernel,
        out_shape=jax.ShapeDtypeStruct((N, D, L, Cm), f32),
        grid=(N, D // Dc),
        in_specs=[
            pl.BlockSpec((1, Dc, L, 2 * VOL), lambda n, d: (n, d, 0, 0)),
            pl.BlockSpec((1, L, VOL), lambda n, d: (n, 0, 0)),
            pl.BlockSpec((1, L, Cm), lambda n, d: (n, 0, 0)),
            pl.BlockSpec((2 * VOL, Cm), lambda n, d: (0, 0)),
            pl.BlockSpec((1, Cm), lambda n, d: (0, 0)),
            pl.BlockSpec((VOL, Cm), lambda n, d: (0, 0)),
            pl.BlockSpec((1, Cm), lambda n, d: (0, 0)),
            pl.BlockSpec((1, Cm), lambda n, d: (0, 0)),
            pl.BlockSpec((1, Cm), lambda n, d: (0, 0)),
        ],
        out_specs=pl.BlockSpec((1, Dc, L, Cm), lambda n, d: (n, d, 0, 0)),
        compiler_params=pltpu.CompilerParams(
            dimension_semantics=("parallel", "parallel"),
            vmem_limit_bytes=vmem_limit),
    )(msa_matrix, seq, recycle_query,
      wb(params['W_msa']), r2(params['b_msa']),
      wb(params['W_qm']), r2(params['b_qm']),
      r2(params['ln_q_g']), r2(params['ln_q_b']))

    # ---- Kernel B: fused pair embedding + PointwiseAttn ----
    W_pd = jnp.concatenate([params['PE'], params['W_dist']], axis=0)   # (48, Cp)
    W_Qs = params['W_Q'] * (1.0 / float(np.sqrt(ppg)))                 # fold attn scale
    W_KV = jnp.concatenate([params['W_K'], params['W_V']], axis=1)     # (Ck, 2*Ck)
    gid = jnp.arange(Ck) // ppg
    GS = (gid[:, None] == gid[None, :]).astype(bf16)                   # (Ck, Ck) group-sum

    TL = _pick_row_tile(L, _pair_row_bytes(L, T, Cp, Ck),
                        _pair_fixed_bytes(L), budget)

    cost = pl.CostEstimate(
        flops=int(2 * N * L * L * (Cp * Ck + 3 * T * Ck * Ck + Ck * Cp
                                   + (NBINS + DIST_C + 2 * VOL) * Cp)),
        transcendentals=int(N * T * L * L * Ck),
        bytes_accessed=int(N * L * L * (2 * Cp * 4 + DIST_C * 4 + T * Ck * 4)),
    )

    rr_edge = pl.pallas_call(
        pair_kernel,
        out_shape=jax.ShapeDtypeStruct((N, L, L, Cp), f32),
        grid=(N, L // TL),
        in_specs=[
            pl.BlockSpec((1, TL, VOL), lambda n, r: (n, r, 0)),
            pl.BlockSpec((1, L, VOL), lambda n, r: (n, 0, 0)),
            pl.BlockSpec((1, TL, L), lambda n, r: (n, r, 0)),
            pl.BlockSpec((1, TL, L, Cp), lambda n, r: (n, r, 0, 0)),
            pl.BlockSpec((1, TL, L, DIST_C), lambda n, r: (n, r, 0, 0)),
            pl.BlockSpec((1, T, TL, L, Ck), lambda n, r: (n, 0, r, 0, 0)),
            pl.BlockSpec((VOL, Cp), lambda n, r: (0, 0)),
            pl.BlockSpec((1, Cp), lambda n, r: (0, 0)),
            pl.BlockSpec((VOL, Cp), lambda n, r: (0, 0)),
            pl.BlockSpec((1, Cp), lambda n, r: (0, 0)),
            pl.BlockSpec((NBINS + DIST_C, Cp), lambda n, r: (0, 0)),
            pl.BlockSpec((1, Cp), lambda n, r: (0, 0)),
            pl.BlockSpec((1, Cp), lambda n, r: (0, 0)),
            pl.BlockSpec((1, Cp), lambda n, r: (0, 0)),
            pl.BlockSpec((Cp, Ck), lambda n, r: (0, 0)),
            pl.BlockSpec((Ck, 2 * Ck), lambda n, r: (0, 0)),
            pl.BlockSpec((Ck, Cp), lambda n, r: (0, 0)),
            pl.BlockSpec((1, Cp), lambda n, r: (0, 0)),
            pl.BlockSpec((Ck, Ck), lambda n, r: (0, 0)),
        ],
        out_specs=pl.BlockSpec((1, TL, L, Cp), lambda n, r: (n, r, 0, 0)),
        compiler_params=pltpu.CompilerParams(
            dimension_semantics=("parallel", "parallel"),
            vmem_limit_bytes=vmem_limit),
        cost_estimate=cost,
    )(seq, seq, seqsep, recycle_rr, recycle_dist, template,
      wb(params['W_l']), r2(params['b_l']),
      wb(params['W_r']), r2(params['b_r']),
      wb(W_pd), r2(params['b_dist']),
      r2(params['ln_rr_g']), r2(params['ln_rr_b']),
      wb(W_Qs), wb(W_KV), wb(params['W_O']), r2(params['b_O']), GS)

    return msa_out, rr_edge


# ---------------- Pure-JAX reference for verification ---------------------- #
def ref_forward(params, msa_matrix, template, idx, recycle_query, recycle_rr,
                recycle_dist, groups=4):
    def ln(x, g, b):
        mu = jnp.mean(x, -1, keepdims=True)
        var = jnp.mean((x - mu) ** 2, -1, keepdims=True)
        return (x - mu) * jax.lax.rsqrt(var + EPS) * g + b

    recycle_dist = recycle_dist.astype(recycle_rr.dtype)
    N, D, L, _ = msa_matrix.shape
    seq = msa_matrix[:, 0, :, :VOL]
    rq = ln(recycle_query, params['ln_q_g'], params['ln_q_b'])
    rr = (ln(recycle_rr, params['ln_rr_g'], params['ln_rr_b'])
          + recycle_dist @ params['W_dist'] + params['b_dist'])
    msa = (msa_matrix @ params['W_msa'] + params['b_msa']
           + (seq @ params['W_qm'] + params['b_qm'])[:, None])
    msa = msa.at[:, 0].add(rq)
    rr_edge = ((seq @ params['W_l'] + params['b_l'])[:, :, None, :]
               + (seq @ params['W_r'] + params['b_r'])[:, None, :, :])
    seqsep = jnp.clip(jnp.abs(idx[:, :, None] - idx[:, None, :]), 0, 32)
    rr_edge = rr_edge + params['PE'][seqsep] + rr

    Ck = params['W_K'].shape[0]
    ppg = Ck // groups
    T = template.shape[1]
    qp = (rr_edge @ params['W_Q']).reshape(N, L, L, groups, ppg)
    k = (template @ params['W_K']).reshape(N, T, L, L, groups, ppg)
    v = (template @ params['W_V']).reshape(N, T, L, L, groups, ppg)
    attn = jnp.einsum('nijgc,ntijgc->ntijg', qp, k / np.sqrt(ppg))
    attn = jax.nn.softmax(attn, axis=1)
    x = jnp.einsum('ntijg,ntijgc->nijgc', attn, v).reshape(N, L, L, Ck)
    rr_edge = rr_edge + x @ params['W_O'] + params['b_O']
    return msa, rr_edge


if __name__ == "__main__":
    key = jax.random.PRNGKey(0)
    # small shapes: batch N=2, MSA depth D=4, seq length L=8, templates T=2
    N, D, L, T = 2, 4, 8, 2
    Cm, Cp, Ck, groups = 128, 128, 64, 4   # MSA / pair / template channels

    ks = jax.random.split(key, 32)

    def lin(k, fin, fout):
        return jax.random.normal(k, (fin, fout), jnp.float32) / np.sqrt(fin)

    params = {
        'W_msa': lin(ks[0], 2 * VOL, Cm),
        'b_msa': 0.02 * jax.random.normal(ks[1], (Cm,), jnp.float32),
        'W_qm': lin(ks[2], VOL, Cm),
        'b_qm': 0.02 * jax.random.normal(ks[3], (Cm,), jnp.float32),
        'W_l': lin(ks[4], VOL, Cp),
        'b_l': 0.02 * jax.random.normal(ks[5], (Cp,), jnp.float32),
        'W_r': lin(ks[6], VOL, Cp),
        'b_r': 0.02 * jax.random.normal(ks[7], (Cp,), jnp.float32),
        'PE': 0.1 * jax.random.normal(ks[8], (NBINS, Cp), jnp.float32),
        'ln_q_g': 1.0 + 0.05 * jax.random.normal(ks[9], (Cm,), jnp.float32),
        'ln_q_b': 0.05 * jax.random.normal(ks[10], (Cm,), jnp.float32),
        'ln_rr_g': 1.0 + 0.05 * jax.random.normal(ks[11], (Cp,), jnp.float32),
        'ln_rr_b': 0.05 * jax.random.normal(ks[12], (Cp,), jnp.float32),
        'W_dist': lin(ks[13], DIST_C, Cp),
        'b_dist': 0.02 * jax.random.normal(ks[14], (Cp,), jnp.float32),
        'W_Q': lin(ks[15], Cp, Ck),
        'W_K': lin(ks[16], Ck, Ck),
        'W_V': lin(ks[17], Ck, Ck),
        'W_O': lin(ks[18], Ck, Cp),
        'b_O': 0.02 * jax.random.normal(ks[19], (Cp,), jnp.float32),
    }

    msa_matrix = jax.random.normal(ks[20], (N, D, L, 2 * VOL), jnp.float32)
    template = jax.random.normal(ks[21], (N, T, L, L, Ck), jnp.float32)
    idx = jnp.tile(jnp.arange(L, dtype=jnp.int32)[None, :], (N, 1))
    recycle_query = jax.random.normal(ks[22], (N, L, Cm), jnp.float32)
    recycle_rr = jax.random.normal(ks[23], (N, L, L, Cp), jnp.float32)
    recycle_dist = jax.random.normal(ks[24], (N, L, L, DIST_C), jnp.float32)

    msa_out, rr_out = jax.block_until_ready(
        tr_embedding_forward(params, msa_matrix, template, idx,
                             recycle_query, recycle_rr, recycle_dist,
                             groups=groups))

    # Reference in explicit f32 matmul precision; kernels use bf16 MXU inputs,
    # bf16 k/v intermediates and f32 accumulation, hence the looser tolerance
    # on rr_edge.
    with jax.default_matmul_precision("float32"):
        msa_ref, rr_ref = ref_forward(params, msa_matrix, template, idx,
                                      recycle_query, recycle_rr, recycle_dist,
                                      groups=groups)
        msa_ref, rr_ref = jax.block_until_ready((msa_ref, rr_ref))

    np.testing.assert_allclose(np.asarray(msa_out), np.asarray(msa_ref),
                               rtol=2e-2, atol=2e-2)
    np.testing.assert_allclose(np.asarray(rr_out), np.asarray(rr_ref),
                               rtol=4e-2, atol=4e-2)
    print("KERNEL_OK")
</pallas_src>

<mosaic_0001>
module attributes {stable_mosaic.version = 11 : i64} {
  func.func @msa_kernel(%arg0: i32, %arg1: i32, %arg2: memref<1x4x8x44xf32, #tpu.memory_space<vmem>>, %arg3: memref<1x8x22xf32, #tpu.memory_space<vmem>>, %arg4: memref<1x8x128xf32, #tpu.memory_space<vmem>>, %arg5: memref<44x128xbf16, #tpu.memory_space<vmem>>, %arg6: memref<1x128xf32, #tpu.memory_space<vmem>>, %arg7: memref<22x128xbf16, #tpu.memory_space<vmem>>, %arg8: memref<1x128xf32, #tpu.memory_space<vmem>>, %arg9: memref<1x128xf32, #tpu.memory_space<vmem>>, %arg10: memref<1x128xf32, #tpu.memory_space<vmem>>, %arg11: memref<1x4x8x128xf32, #tpu.memory_space<vmem>>) attributes {dimension_semantics = [#tpu.dimension_semantics<parallel>, #tpu.dimension_semantics<parallel>], iteration_bounds = array<i64: 2, 1>, scalar_prefetch = 0 : i64, scratch_operands = 0 : i64, tpu.core_type = #tpu.core_type<tc>, window_params = [{transform_indices = @transform_0, window_bounds = array<i64: 1, 4, 8, 44>}, {transform_indices = @transform_1, window_bounds = array<i64: 1, 8, 22>}, {transform_indices = @transform_2, window_bounds = array<i64: 1, 8, 128>}, {pipeline_mode = #tpu.pipeline_mode<synchronous>, transform_indices = @transform_3, window_bounds = array<i64: 44, 128>}, {pipeline_mode = #tpu.pipeline_mode<synchronous>, transform_indices = @transform_4, window_bounds = array<i64: 1, 128>}, {pipeline_mode = #tpu.pipeline_mode<synchronous>, transform_indices = @transform_5, window_bounds = array<i64: 22, 128>}, {pipeline_mode = #tpu.pipeline_mode<synchronous>, transform_indices = @transform_6, window_bounds = array<i64: 1, 128>}, {pipeline_mode = #tpu.pipeline_mode<synchronous>, transform_indices = @transform_7, window_bounds = array<i64: 1, 128>}, {pipeline_mode = #tpu.pipeline_mode<synchronous>, transform_indices = @transform_8, window_bounds = array<i64: 1, 128>}, {transform_indices = @transform_9, window_bounds = array<i64: 1, 4, 8, 128>}]} {
    %c0 = arith.constant 0 : index
    %c0_0 = arith.constant 0 : index
    %c0_1 = arith.constant 0 : index
    %c0_2 = arith.constant 0 : index
    %0 = vector.load %arg2[%c0, %c0_0, %c0_1, %c0_2] : memref<1x4x8x44xf32, #tpu.memory_space<vmem>>, vector<1x4x8x44xf32>
    %1 = vector.shape_cast %0 : vector<1x4x8x44xf32> to vector<4x8x44xf32>
    %2 = arith.truncf %1 : vector<4x8x44xf32> to vector<4x8x44xbf16>
    %3 = vector.shape_cast %2 : vector<4x8x44xbf16> to vector<32x44xbf16>
    %c0_3 = arith.constant 0 : index
    %c0_4 = arith.constant 0 : index
    %4 = vector.load %arg5[%c0_3, %c0_4] : memref<44x128xbf16, #tpu.memory_space<vmem>>, vector<44x128xbf16>
    %cst = arith.constant dense<0.000000e+00> : vector<32x128xf32>
    %5 = tpu.matmul %3, %4, %cst {dimension_numbers = #tpu.dot_dimension_numbers<[1], [0], [0], [1], [0, 0, 1, 1], [], []>} : vector<32x44xbf16>, vector<44x128xbf16>, vector<32x128xf32> -> vector<32x128xf32>
    %c0_5 = arith.constant 0 : index
    %c0_6 = arith.constant 0 : index
    %6 = vector.load %arg6[%c0_5, %c0_6] : memref<1x128xf32, #tpu.memory_space<vmem>>, vector<1x128xf32>
    %7 = vector.broadcast %6 : vector<1x128xf32> to vector<32x128xf32>
    %8 = arith.addf %5, %7 : vector<32x128xf32>
    %c0_7 = arith.constant 0 : index
    %c0_8 = arith.constant 0 : index
    %c0_9 = arith.constant 0 : index
    %9 = vector.load %arg3[%c0_7, %c0_8, %c0_9] : memref<1x8x22xf32, #tpu.memory_space<vmem>>, vector<1x8x22xf32>
    %10 = vector.shape_cast %9 : vector<1x8x22xf32> to vector<8x22xf32>
    %11 = arith.truncf %10 : vector<8x22xf32> to vector<8x22xbf16>
    %c0_10 = arith.constant 0 : index
    %c0_11 = arith.constant 0 : index
    %12 = vector.load %arg7[%c0_10, %c0_11] : memref<22x128xbf16, #tpu.memory_space<vmem>>, vector<22x128xbf16>
    %cst_12 = arith.constant dense<0.000000e+00> : vector<8x128xf32>
    %13 = tpu.matmul %11, %12, %cst_12 {dimension_numbers = #tpu.dot_dimension_numbers<[1], [0], [0], [1], [0, 0, 1, 1], [], []>} : vector<8x22xbf16>, vector<22x128xbf16>, vector<8x128xf32> -> vector<8x128xf32>
    %c0_13 = arith.constant 0 : index
    %c0_14 = arith.constant 0 : index
    %14 = vector.load %arg8[%c0_13, %c0_14] : memref<1x128xf32, #tpu.memory_space<vmem>>, vector<1x128xf32>
    %15 = vector.broadcast %14 : vector<1x128xf32> to vector<8x128xf32>
    %16 = arith.addf %13, %15 : vector<8x128xf32>
    %17 = vector.shape_cast %8 : vector<32x128xf32> to vector<4x8x128xf32>
    %18 = vector.shape_cast %16 : vector<8x128xf32> to vector<1x8x128xf32>
    %19 = vector.broadcast %18 : vector<1x8x128xf32> to vector<4x8x128xf32>
    %20 = arith.addf %17, %19 : vector<4x8x128xf32>
    %c0_15 = arith.constant 0 : index
    %c0_16 = arith.constant 0 : index
    %c0_17 = arith.constant 0 : index
    %c0_18 = arith.constant 0 : index
    %21 = vector.load %arg11[%c0_15, %c0_16, %c0_17, %c0_18] : memref<1x4x8x128xf32, #tpu.memory_space<vmem>>, vector<1x4x8x128xf32>
    %22 = vector.shape_cast %21 : vector<1x4x8x128xf32> to vector<4x8x128xf32>
    %23 = vector.shape_cast %20 : vector<4x8x128xf32> to vector<1x4x8x128xf32>
    tpu.vector_store %arg11[%c0_15, %c0_16, %c0_17, %c0_18], %23 {strides = array<i32>} : memref<1x4x8x128xf32, #tpu.memory_space<vmem>>, vector<1x4x8x128xf32>,
    %c0_i32 = arith.constant 0 : i32
    %24 = arith.cmpi eq, %arg1, %c0_i32 : i32
    %25 = arith.extui %24 : i1 to i32
    %c0_i32_19 = arith.constant 0 : i32
    %26 = arith.cmpi ne, %25, %c0_i32_19 : i32
    scf.if %26 {
      %c0_20 = arith.constant 0 : index
      %c0_21 = arith.constant 0 : index
      %c0_22 = arith.constant 0 : index
      %27 = vector.load %arg4[%c0_20, %c0_21, %c0_22] : memref<1x8x128xf32, #tpu.memory_space<vmem>>, vector<1x8x128xf32>
      %28 = vector.shape_cast %27 : vector<1x8x128xf32> to vector<8x128xf32>
      %cst_23 = arith.constant dense<0.000000e+00> : vector<8xf32>
      %29 = vector.multi_reduction <add>, %28, %cst_23 [1] : vector<8x128xf32> to vector<8xf32>
      %30 = vector.shape_cast %29 : vector<8xf32> to vector<8x1xf32>
      %cst_24 = arith.constant 1.280000e+02 : f32
      %31 = vector.broadcast %cst_24 : f32 to vector<8x1xf32>
      %32 = arith.divf %30, %31 : vector<8x1xf32>
      %33 = vector.broadcast %32 : vector<8x1xf32> to vector<8x128xf32>
      %34 = arith.subf %28, %33 : vector<8x128xf32>
      %35 = arith.mulf %34, %34 : vector<8x128xf32>
      %cst_25 = arith.constant dense<0.000000e+00> : vector<8xf32>
      %36 = vector.multi_reduction <add>, %35, %cst_25 [1] : vector<8x128xf32> to vector<8xf32>
      %37 = vector.shape_cast %36 : vector<8xf32> to vector<8x1xf32>
      %cst_26 = arith.constant 1.280000e+02 : f32
      %38 = vector.broadcast %cst_26 : f32 to vector<8x1xf32>
      %39 = arith.divf %37, %38 : vector<8x1xf32>
      %40 = vector.broadcast %32 : vector<8x1xf32> to vector<8x128xf32>
      %41 = arith.subf %28, %40 : vector<8x128xf32>
      %cst_27 = arith.constant 9.99999974E-6 : f32
      %42 = vector.broadcast %cst_27 : f32 to vector<8x1xf32>
      %43 = arith.addf %39, %42 : vector<8x1xf32>
      %44 = math.rsqrt %43 : vector<8x1xf32>
      %45 = vector.broadcast %44 : vector<8x1xf32> to vector<8x128xf32>
      %46 = arith.mulf %41, %45 : vector<8x128xf32>
      %c0_28 = arith.constant 0 : index
      %c0_29 = arith.constant 0 : index
      %47 = vector.load %arg9[%c0_28, %c0_29] : memref<1x128xf32, #tpu.memory_space<vmem>>, vector<1x128xf32>
      %48 = vector.broadcast %47 : vector<1x128xf32> to vector<8x128xf32>
      %49 = arith.mulf %46, %48 : vector<8x128xf32>
      %c0_30 = arith.constant 0 : index
      %c0_31 = arith.constant 0 : index
      %50 = vector.load %arg10[%c0_30, %c0_31] : memref<1x128xf32, #tpu.memory_space<vmem>>, vector<1x128xf32>
      %51 = vector.broadcast %50 : vector<1x128xf32> to vector<8x128xf32>
      %52 = arith.addf %49, %51 : vector<8x128xf32>
      %c0_32 = arith.constant 0 : index
      %c0_33 = arith.constant 0 : index
      %c0_34 = arith.constant 0 : index
      %c0_35 = arith.constant 0 : index
      %53 = vector.load %arg11[%c0_32, %c0_33, %c0_34, %c0_35] : memref<1x4x8x128xf32, #tpu.memory_space<vmem>>, vector<1x1x8x128xf32>
      %54 = vector.shape_cast %53 : vector<1x1x8x128xf32> to vector<8x128xf32>
      %55 = arith.addf %54, %52 : vector<8x128xf32>
      %c0_36 = arith.constant 0 : index
      %c0_37 = arith.constant 0 : index
      %c0_38 = arith.constant 0 : index
      %c0_39 = arith.constant 0 : index
      %56 = vector.load %arg11[%c0_36, %c0_37, %c0_38, %c0_39] : memref<1x4x8x128xf32, #tpu.memory_space<vmem>>, vector<1x1x8x128xf32>
      %57 = vector.shape_cast %56 : vector<1x1x8x128xf32> to vector<8x128xf32>
      %58 = vector.shape_cast %55 : vector<8x128xf32> to vector<1x1x8x128xf32>
      tpu.vector_store %arg11[%c0_36, %c0_37, %c0_38, %c0_39], %58 {strides = array<i32>} : memref<1x4x8x128xf32, #tpu.memory_space<vmem>>, vector<1x1x8x128xf32>,
    } else {
    }
    return
  }
  func.func @transform_0(%arg0: i32, %arg1: i32) -> (i32, i32, i32, i32) {
    %c0_i32 = arith.constant 0 : i32
    %c0_i32_0 = arith.constant 0 : i32
    %c0_i32_1 = arith.constant 0 : i32
    return %arg0, %arg1, %c0_i32, %c0_i32_0 : i32, i32, i32, i32
  }
  func.func @transform_1(%arg0: i32, %arg1: i32) -> (i32, i32, i32) {
    %c0_i32 = arith.constant 0 : i32
    %c0_i32_0 = arith.constant 0 : i32
    %c0_i32_1 = arith.constant 0 : i32
    return %arg0, %c0_i32, %c0_i32_0 : i32, i32, i32
  }
  func.func @transform_2(%arg0: i32, %arg1: i32) -> (i32, i32, i32) {
    %c0_i32 = arith.constant 0 : i32
    %c0_i32_0 = arith.constant 0 : i32
    %c0_i32_1 = arith.constant 0 : i32
    return %arg0, %c0_i32, %c0_i32_0 : i32, i32, i32
  }
  func.func @transform_3(%arg0: i32, %arg1: i32) -> (i32, i32) {
    %c0_i32 = arith.constant 0 : i32
    %c0_i32_0 = arith.constant 0 : i32
    %c0_i32_1 = arith.constant 0 : i32
    return %c0_i32, %c0_i32_0 : i32, i32
  }
  func.func @transform_4(%arg0: i32, %arg1: i32) -> (i32, i32) {
    %c0_i32 = arith.constant 0 : i32
    %c0_i32_0 = arith.constant 0 : i32
    %c0_i32_1 = arith.constant 0 : i32
    return %c0_i32, %c0_i32_0 : i32, i32
  }
  func.func @transform_5(%arg0: i32, %arg1: i32) -> (i32, i32) {
    %c0_i32 = arith.constant 0 : i32
    %c0_i32_0 = arith.constant 0 : i32
    %c0_i32_1 = arith.constant 0 : i32
    return %c0_i32, %c0_i32_0 : i32, i32
  }
  func.func @transform_6(%arg0: i32, %arg1: i32) -> (i32, i32) {
    %c0_i32 = arith.constant 0 : i32
    %c0_i32_0 = arith.constant 0 : i32
    %c0_i32_1 = arith.constant 0 : i32
    return %c0_i32, %c0_i32_0 : i32, i32
  }
  func.func @transform_7(%arg0: i32, %arg1: i32) -> (i32, i32) {
    %c0_i32 = arith.constant 0 : i32
    %c0_i32_0 = arith.constant 0 : i32
    %c0_i32_1 = arith.constant 0 : i32
    return %c0_i32, %c0_i32_0 : i32, i32
  }
  func.func @transform_8(%arg0: i32, %arg1: i32) -> (i32, i32) {
    %c0_i32 = arith.constant 0 : i32
    %c0_i32_0 = arith.constant 0 : i32
    %c0_i32_1 = arith.constant 0 : i32
    return %c0_i32, %c0_i32_0 : i32, i32
  }
  func.func @transform_9(%arg0: i32, %arg1: i32) -> (i32, i32, i32, i32) {
    %c0_i32 = arith.constant 0 : i32
    %c0_i32_0 = arith.constant 0 : i32
    %c0_i32_1 = arith.constant 0 : i32
    return %arg0, %arg1, %c0_i32, %c0_i32_0 : i32, i32, i32, i32
  }
}

</mosaic_0001>

<llo_original>
// kernel: tpu_custom_call.1
$region0: #{tpu_custom_call.1}
  #allocation0 [shape = 'u32[]', space=smem, size = 0x4, offset = 0x4, fixed_abs, tag = 'smem constant byte address 0x4 - core index']
  #allocation1 [shape = 'u32[144,128]{1,0:T(1,128)}', space=vmem, size = 0x12000, scoped, tag = 'internal scratch']
  %s0 = inlined_call_operand.hbm [shape: f32[2,4,8,44], index: 0, kind: input, shape index: {}]
  %s1 = inlined_call_operand.hbm [shape: f32[2,8,22], index: 1, kind: input, shape index: {}]
  %s2 = inlined_call_operand.hbm [shape: f32[2,8,128], index: 2, kind: input, shape index: {}]
  %s3 = inlined_call_operand.hbm [shape: bf16[44,128], index: 3, kind: input, shape index: {}]
  %s4 = inlined_call_operand.vmem [shape: f32[1,128], index: 4, kind: input, shape index: {}]
  %s5 = inlined_call_operand.hbm [shape: bf16[22,128], index: 5, kind: input, shape index: {}]
  %s6 = inlined_call_operand.vmem [shape: f32[1,128], index: 6, kind: input, shape index: {}]
  %s7 = inlined_call_operand.vmem [shape: f32[1,128], index: 7, kind: input, shape index: {}]
  %s8 = inlined_call_operand.vmem [shape: f32[1,128], index: 8, kind: input, shape index: {}]
  %s9 = inlined_call_operand.hbm [shape: f32[2,4,8,128], index: 9, kind: output, shape index: {}]
  %s10 = sld [smem:[#allocation0]]
  $region93: #{tpu_custom_call.1} parent=0
    _
  %s12 = ssub.s32 1, %s10
  %s13 = scalar_select 0, %s12, %s10
  $region1: #{tpu_custom_call.1} parent=0
    #allocation2 [shape = 'u8[32768]{0}', space=vmem, size = 0x8000, scoped, tag = 'input window, operand 0']
    #allocation3 [shape = 's32[2]{0}', space=sflag, size = 0x8, scoped, tag = 'scoped memory for tpu_custom_call.1']
    #allocation4 [shape = 's32[2]{0}', space=sflag, size = 0x8, scoped, tag = 'scoped memory for tpu_custom_call.1']
    #allocation5 [shape = 'u8[8192]{0}', space=vmem, size = 0x2000, scoped, tag = 'input window, operand 1']
    #allocation6 [shape = 's32[2]{0}', space=sflag, size = 0x8, scoped, tag = 'scoped memory for tpu_custom_call.1']
    #allocation7 [shape = 'u8[8192]{0}', space=vmem, size = 0x2000, scoped, tag = 'input window, operand 2']
    #allocation8 [shape = 'u8[12288]{0}', space=vmem, size = 0x3000, scoped, tag = 'input window, operand 3, single buffered']
    #allocation9 [shape = 's32[1]{0}', space=sflag, size = 0x4, scoped, tag = 'scoped memory for tpu_custom_call.1']
    #allocation10 [shape = 'u8[6144]{0}', space=vmem, size = 0x1800, scoped, tag = 'input window, operand 5, single buffered']
    #allocation11 [shape = 'u8[32768]{0}', space=vmem, size = 0x8000, scoped, tag = 'output window, operand 0']
    %14 = vsyncpa [#allocation3], 0
    %s15 = scalar_lea.sflag [#allocation3], 1
    %16 = vsyncpa %s15, 0
    %17 = vsyncpa [#allocation6], 0
    %s18 = scalar_lea.sflag [#allocation6], 1
    %19 = vsyncpa %s18, 0
    %20 = vsyncpa [#allocation9], 0
    %21 = vsyncpa [#allocation4], 0
    %s22 = scalar_lea.sflag [#allocation4], 1
    %23 = vsyncpa %s22, 0
    loop: start=0, step=1, limit=4
    $region2: #{tpu_custom_call.1} parent=1 // loop_pre_header
      _
    $region3: #{tpu_custom_call.1} parent=1 // loop_header
      %s25 = sphi 0, %s29
      %p26 = scmp.ge.s32.totalorder %s25, 4
      %s32 = sphi 0, %s44
      %s33 = sphi 0, %s40
      %s34 = sphi 0, %s32
      %s35 = sphi 0, %s33
      %s36 = sphi 0, %s34
      %s37 = sphi 0, %s35
      %s49 = sphi 0, %s51
      %s52 = sphi 0, %s49
      %s53 = sphi 0, %s52
      %s69 = sphi 0, %s53
      %s75 = sphi 0, %s77
      %s78 = sphi 0, %s75
      %s79 = sphi 0, %s78
      %s95 = sphi 0, %s79
      %s101 = sphi 0, %s103
      %s104 = sphi 0, %s101
      %s105 = sphi 0, %s104
      %s121 = sphi 0, %s105
      %s125 = sphi 0, %s125
      %s127 = sphi 0, %s125
      %s128 = sphi 0, %s127
      %s142 = sphi 0, %s128
      %s146 = sphi 0, %s146
      %s148 = sphi 0, %s146
      %s149 = sphi 0, %s148
      %s163 = sphi 0, %s149
      %s167 = sphi 0, %s167
      %s169 = sphi 0, %s167
      %s170 = sphi 0, %s169
      %s184 = sphi 0, %s170
      %s188 = sphi 0, %s188
      %s190 = sphi 0, %s188
      %s191 = sphi 0, %s190
      %s205 = sphi 0, %s191
      %s209 = sphi 0, %s209
      %s211 = sphi 0, %s209
      %s212 = sphi 0, %s211
      %s226 = sphi 0, %s212
      %s230 = sphi 0, %s230
      %s232 = sphi 0, %s230
      %s233 = sphi 0, %s232
      %s247 = sphi 0, %s233
      %s255 = sphi 0, %s257
      %s258 = sphi 0, %s255
      %s259 = sphi 0, %s258
      %s275 = sphi 0, %s259
    $region4: #{tpu_custom_call.1} parent=1 // loop_header_branch
      %28 = sbr.rel (%p26) target = $region8
    $region5: #{tpu_custom_call.1} parent=1 // loop_body
      %s30 = ssub.s32 %s25, 1
      %s31 = ssub.s32 %s25, 2
      %s38 = sadd.s32 1, %s33
      %p39 = scmp.ge.s32.totalorder %s38, 1
      %s40 = scalar_select %p39, 0, %s38
      %s41 = sadd.s32 1, %s32
      %s42 = scalar_select %p39, %s41, %s32
      %p43 = scmp.ge.s32.totalorder %s42, 2
      %s44 = scalar_select %p43, 0, %s42
      %s45 = ssub.s32 %s32, %s44
      %s46 = ssub.s32 %s33, %s40
      %s47 = sor.u32 %s45, %s46
      %p48 = scmp.eq.s32.totalorder %s47, 0
      %s50 = sadd.s32 %s49, 1
      %s51 = scalar_select %p48, %s49, %s50
      %p54 = pneg %p48
      %p55 = scmp.eq.s32.totalorder %s25, 1
      %p56 = por %p54, %p55
      %p57 = scmp.ne.s32.totalorder %s49, %s52
      %p58 = scmp.eq.s32.totalorder %s25, 0
      %p59 = por %p57, %p58
      %p60 = scmp.ne.s32.totalorder %s49, %s52
      %p61 = scmp.eq.s32.totalorder %s30, 1
      %p62 = por %p60, %p61
      %p63 = scmp.ne.s32.totalorder %s52, %s53
      %p64 = scmp.eq.s32.totalorder %s30, 0
      %p65 = por %p63, %p64
      %p66 = scmp.ne.s32.totalorder %s52, %s53
      %p67 = scmp.eq.s32.totalorder %s31, 1
      %p68 = por %p66, %p67
      %p70 = scmp.ne.s32.totalorder %s53, %s69
      %p71 = scmp.eq.s32.totalorder %s31, 0
      %p72 = por %p70, %p71
      %s73 = ssub.s32 %s32, %s44
      %p74 = scmp.eq.s32.totalorder %s73, 0
      %s76 = sadd.s32 %s75, 1
      %s77 = scalar_select %p74, %s75, %s76
      %p80 = pneg %p74
      %p81 = scmp.eq.s32.totalorder %s25, 1
      %p82 = por %p80, %p81
      %p83 = scmp.ne.s32.totalorder %s75, %s78
      %p84 = scmp.eq.s32.totalorder %s25, 0
      %p85 = por %p83, %p84
      %p86 = scmp.ne.s32.totalorder %s75, %s78
      %p87 = scmp.eq.s32.totalorder %s30, 1
      %p88 = por %p86, %p87
      %p89 = scmp.ne.s32.totalorder %s78, %s79
      %p90 = scmp.eq.s32.totalorder %s30, 0
      %p91 = por %p89, %p90
      %p92 = scmp.ne.s32.totalorder %s78, %s79
      %p93 = scmp.eq.s32.totalorder %s31, 1
      %p94 = por %p92, %p93
      %p96 = scmp.ne.s32.totalorder %s79, %s95
      %p97 = scmp.eq.s32.totalorder %s31, 0
      %p98 = por %p96, %p97
      %s99 = ssub.s32 %s32, %s44
      %p100 = scmp.eq.s32.totalorder %s99, 0
      %s102 = sadd.s32 %s101, 1
      %s103 = scalar_select %p100, %s101, %s102
      %p106 = pneg %p100
      %p107 = scmp.eq.s32.totalorder %s25, 1
      %p108 = por %p106, %p107
      %p109 = scmp.ne.s32.totalorder %s101, %s104
      %p110 = scmp.eq.s32.totalorder %s25, 0
      %p111 = por %p109, %p110
      %p112 = scmp.ne.s32.totalorder %s101, %s104
      %p113 = scmp.eq.s32.totalorder %s30, 1
      %p114 = por %p112, %p113
      %p115 = scmp.ne.s32.totalorder %s104, %s105
      %p116 = scmp.eq.s32.totalorder %s30, 0
      %p117 = por %p115, %p116
      %p118 = scmp.ne.s32.totalorder %s104, %s105
      %p119 = scmp.eq.s32.totalorder %s31, 1
      %p120 = por %p118, %p119
      %p122 = scmp.ne.s32.totalorder %s105, %s121
      %p123 = scmp.eq.s32.totalorder %s31, 0
      %p124 = por %p122, %p123
      %s126 = sadd.s32 %s125, 1
      %p129 = scmp.eq.s32.totalorder %s25, 1
      %p130 = scmp.ne.s32.totalorder %s125, %s127
      %p131 = scmp.eq.s32.totalorder %s25, 0
      %p132 = por %p130, %p131
      %p133 = scmp.ne.s32.totalorder %s125, %s127
      %p134 = scmp.eq.s32.totalorder %s30, 1
      %p135 = por %p133, %p134
      %p136 = scmp.ne.s32.totalorder %s127, %s128
      %p137 = scmp.eq.s32.totalorder %s30, 0
      %p138 = por %p136, %p137
      %p139 = scmp.ne.s32.totalorder %s127, %s128
      %p140 = scmp.eq.s32.totalorder %s31, 1
      %p141 = por %p139, %p140
      %p143 = scmp.ne.s32.totalorder %s128, %s142
      %p144 = scmp.eq.s32.totalorder %s31, 0
      %p145 = por %p143, %p144
      %s147 = sadd.s32 %s146, 1
      %p150 = scmp.eq.s32.totalorder %s25, 1
      %p151 = scmp.ne.s32.totalorder %s146, %s148
      %p152 = scmp.eq.s32.totalorder %s25, 0
      %p153 = por %p151, %p152
      %p154 = scmp.ne.s32.totalorder %s146, %s148
      %p155 = scmp.eq.s32.totalorder %s30, 1
      %p156 = por %p154, %p155
      %p157 = scmp.ne.s32.totalorder %s148, %s149
      %p158 = scmp.eq.s32.totalorder %s30, 0
      %p159 = por %p157, %p158
      %p160 = scmp.ne.s32.totalorder %s148, %s149
      %p161 = scmp.eq.s32.totalorder %s31, 1
      %p162 = por %p160, %p161
      %p164 = scmp.ne.s32.totalorder %s149, %s163
      %p165 = scmp.eq.s32.totalorder %s31, 0
      %p166 = por %p164, %p165
      %s168 = sadd.s32 %s167, 1
      %p171 = scmp.eq.s32.totalorder %s25, 1
      %p172 = scmp.ne.s32.totalorder %s167, %s169
      %p173 = scmp.eq.s32.totalorder %s25, 0
      %p174 = por %p172, %p173
      %p175 = scmp.ne.s32.totalorder %s167, %s169
      %p176 = scmp.eq.s32.totalorder %s30, 1
      %p177 = por %p175, %p176
      %p178 = scmp.ne.s32.totalorder %s169, %s170
      %p179 = scmp.eq.s32.totalorder %s30, 0
      %p180 = por %p178, %p179
      %p181 = scmp.ne.s32.totalorder %s169, %s170
      %p182 = scmp.eq.s32.totalorder %s31, 1
      %p183 = por %p181, %p182
      %p185 = scmp.ne.s32.totalorder %s170, %s184
      %p186 = scmp.eq.s32.totalorder %s31, 0
      %p187 = por %p185, %p186
      %s189 = sadd.s32 %s188, 1
      %p192 = scmp.eq.s32.totalorder %s25, 1
      %p193 = scmp.ne.s32.totalorder %s188, %s190
      %p194 = scmp.eq.s32.totalorder %s25, 0
      %p195 = por %p193, %p194
      %p196 = scmp.ne.s32.totalorder %s188, %s190
      %p197 = scmp.eq.s32.totalorder %s30, 1
      %p198 = por %p196, %p197
      %p199 = scmp.ne.s32.totalorder %s190, %s191
      %p200 = scmp.eq.s32.totalorder %s30, 0
      %p201 = por %p199, %p200
      %p202 = scmp.ne.s32.totalorder %s190, %s191
      %p203 = scmp.eq.s32.totalorder %s31, 1
      %p204 = por %p202, %p203
      %p206 = scmp.ne.s32.totalorder %s191, %s205
      %p207 = scmp.eq.s32.totalorder %s31, 0
      %p208 = por %p206, %p207
      %s210 = sadd.s32 %s209, 1
      %p213 = scmp.eq.s32.totalorder %s25, 1
      %p214 = scmp.ne.s32.totalorder %s209, %s211
      %p215 = scmp.eq.s32.totalorder %s25, 0
      %p216 = por %p214, %p215
      %p217 = scmp.ne.s32.totalorder %s209, %s211
      %p218 = scmp.eq.s32.totalorder %s30, 1
      %p219 = por %p217, %p218
      %p220 = scmp.ne.s32.totalorder %s211, %s212
      %p221 = scmp.eq.s32.totalorder %s30, 0
      %p222 = por %p220, %p221
      %p223 = scmp.ne.s32.totalorder %s211, %s212
      %p224 = scmp.eq.s32.totalorder %s31, 1
      %p225 = por %p223, %p224
      %p227 = scmp.ne.s32.totalorder %s212, %s226
      %p228 = scmp.eq.s32.totalorder %s31, 0
      %p229 = por %p227, %p228
      %s231 = sadd.s32 %s230, 1
      %p234 = scmp.eq.s32.totalorder %s25, 1
      %p235 = scmp.ne.s32.totalorder %s230, %s232
      %p236 = scmp.eq.s32.totalorder %s25, 0
      %p237 = por %p235, %p236
      %p238 = scmp.ne.s32.totalorder %s230, %s232
      %p239 = scmp.eq.s32.totalorder %s30, 1
      %p240 = por %p238, %p239
      %p241 = scmp.ne.s32.totalorder %s232, %s233
      %p242 = scmp.eq.s32.totalorder %s30, 0
      %p243 = por %p241, %p242
      %p244 = scmp.ne.s32.totalorder %s232, %s233
      %p245 = scmp.eq.s32.totalorder %s31, 1
      %p246 = por %p244, %p245
      %p248 = scmp.ne.s32.totalorder %s233, %s247
      %p249 = scmp.eq.s32.totalorder %s31, 0
      %p250 = por %p248, %p249
      %s251 = ssub.s32 %s32, %s44
      %s252 = ssub.s32 %s33, %s40
      %s253 = sor.u32 %s251, %s252
      %p254 = scmp.eq.s32.totalorder %s253, 0
      %s256 = sadd.s32 %s255, 1
      %s257 = scalar_select %p254, %s255, %s256
      %p260 = pneg %p254
      %p261 = scmp.eq.s32.totalorder %s25, 1
      %p262 = por %p260, %p261
      %p263 = scmp.ne.s32.totalorder %s255, %s258
      %p264 = scmp.eq.s32.totalorder %s25, 0
      %p265 = por %p263, %p264
      %p266 = scmp.ne.s32.totalorder %s255, %s258
      %p267 = scmp.eq.s32.totalorder %s30, 1
      %p268 = por %p266, %p267
      %p269 = scmp.ne.s32.totalorder %s258, %s259
      %p270 = scmp.eq.s32.totalorder %s30, 0
      %p271 = por %p269, %p270
      %p272 = scmp.ne.s32.totalorder %s258, %s259
      %p273 = scmp.eq.s32.totalorder %s31, 1
      %p274 = por %p272, %p273
      %p276 = scmp.ne.s32.totalorder %s259, %s275
      %p277 = scmp.eq.s32.totalorder %s31, 0
      %p278 = por %p276, %p277
      %p279 = scmp.le.s32.totalorder 1, %s25
      %p280 = scmp.lt.s32.totalorder %s25, 3
      %p281 = pnand %p279, %p280
      %p282 = pneg %p281
      // Predicated region
      $region9: #{tpu_custom_call.1} parent=5 // pred_check
        _
      $region10: #{tpu_custom_call.1} parent=5 // pred_check_branch
        %284 = sbr.rel (%p281) target = $region12
      $region11: #{tpu_custom_call.1} parent=5 // pred_region
        %s285 = ssub.s32 %s25, 1
        // Predicated region
        $region13: #{tpu_custom_call.1} parent=11 // pred_check
          %p286 = pneg %p138
        $region14: #{tpu_custom_call.1} parent=11 // pred_check_branch
          %288 = sbr.rel (%p286) target = $region16
        $region15: #{tpu_custom_call.1} parent=11 // pred_region
          %s290 = ssub.s32 384, 384
          %291 = vsyncadd [#allocation9], %s290
          %s292 = sshll.u32 [#allocation8], 4
          %s293 = int_to_ptr.vmem [resolvable:$true] %s292
          %298 = dma.hbm_to_vmem [thread:$0]  %s3, 384, %s293, [#allocation9], 64, 64, 4
        $region16: #{tpu_custom_call.1} parent=11 // pred_fallthru
          _
        // Predicated region
        $region17: #{tpu_custom_call.1} parent=11 // pred_check
          %p299 = pneg %p159
        $region18: #{tpu_custom_call.1} parent=11 // pred_check_branch
          %301 = sbr.rel (%p299) target = $region20
        $region19: #{tpu_custom_call.1} parent=11 // pred_region
          _
        $region20: #{tpu_custom_call.1} parent=11 // pred_fallthru
          _
        // Predicated region
        $region21: #{tpu_custom_call.1} parent=11 // pred_check
          %p302 = pneg %p180
        $region22: #{tpu_custom_call.1} parent=11 // pred_check_branch
          %304 = sbr.rel (%p302) target = $region24
        $region23: #{tpu_custom_call.1} parent=11 // pred_region
          %s306 = ssub.s32 192, 192
          %307 = vsyncadd [#allocation9], %s306
          %s308 = sshll.u32 [#allocation10], 4
          %s309 = int_to_ptr.vmem [resolvable:$true] %s308
          %314 = dma.hbm_to_vmem [thread:$0]  %s5, 192, %s309, [#allocation9], 64, 64, 4
        $region24: #{tpu_custom_call.1} parent=11 // pred_fallthru
          _
        // Predicated region
        $region25: #{tpu_custom_call.1} parent=11 // pred_check
          %p315 = pneg %p201
        $region26: #{tpu_custom_call.1} parent=11 // pred_check_branch
          %317 = sbr.rel (%p315) target = $region28
        $region27: #{tpu_custom_call.1} parent=11 // pred_region
          _
        $region28: #{tpu_custom_call.1} parent=11 // pred_fallthru
          _
        // Predicated region
        $region29: #{tpu_custom_call.1} parent=11 // pred_check
          %p318 = pneg %p222
        $region30: #{tpu_custom_call.1} parent=11 // pred_check_branch
          %320 = sbr.rel (%p318) target = $region32
        $region31: #{tpu_custom_call.1} parent=11 // pred_region
          _
        $region32: #{tpu_custom_call.1} parent=11 // pred_fallthru
          _
        // Predicated region
        $region33: #{tpu_custom_call.1} parent=11 // pred_check
          %p321 = pneg %p243
        $region34: #{tpu_custom_call.1} parent=11 // pred_check_branch
          %323 = sbr.rel (%p321) target = $region36
        $region35: #{tpu_custom_call.1} parent=11 // pred_region
          _
        $region36: #{tpu_custom_call.1} parent=11 // pred_fallthru
          _
      $region12: #{tpu_custom_call.1} parent=5 // pred_fallthru
        _
      %p324 = scmp.lt.s32.totalorder %s25, 2
      // Predicated region
      $region37: #{tpu_custom_call.1} parent=5 // pred_check
        %p325 = pneg %p324
      $region38: #{tpu_custom_call.1} parent=5 // pred_check_branch
        %327 = sbr.rel (%p325) target = $region40
      $region39: #{tpu_custom_call.1} parent=5 // pred_region
        // Predicated region
        $region41: #{tpu_custom_call.1} parent=39 // pred_check
          %p328 = pneg %p59
        $region42: #{tpu_custom_call.1} parent=39 // pred_check_branch
          %330 = sbr.rel (%p328) target = $region44
        $region43: #{tpu_custom_call.1} parent=39 // pred_region
          %s331 = sand.u32 %s49, 1
          %s332 = scalar_lea.sflag [#allocation3], %s331
          %s333 = sand.u32 %s49, 1
          %s334 = smul.addr %s333, 32
          %s335 = scalar_lea.vmem [#allocation2], %s334
          %s336 = smul.u32 4, %s33
          %s338 = ssub.s32 512, 512
          %339 = vsyncadd %s332, %s338
          %s340 = smul.addr %s32, 4
          %s341 = sadd.s32 %s336, %s340
          %s342 = smul.addr %s341, 128
          %s343 = scalar_lea.hbm %s0, %s342
          %s344 = sshll.u32 %s335, 4
          %s345 = int_to_ptr.vmem [resolvable:$true] %s344
          %350 = dma.hbm_to_vmem [thread:$0]  %s343, 512, %s345, %s332, 128, 128, 8
        $region44: #{tpu_custom_call.1} parent=39 // pred_fallthru
          _
        // Predicated region
        $region45: #{tpu_custom_call.1} parent=39 // pred_check
          %p351 = pneg %p85
        $region46: #{tpu_custom_call.1} parent=39 // pred_check_branch
          %353 = sbr.rel (%p351) target = $region48
        $region47: #{tpu_custom_call.1} parent=39 // pred_region
          %s354 = sand.u32 %s25, 1
          %s355 = scalar_lea.sflag [#allocation6], %s354
          %s356 = sand.u32 %s75, 1
          %s357 = smul.addr %s356, 8
          %s358 = scalar_lea.vmem [#allocation5], %s357
          %s360 = ssub.s32 128, 128
          %361 = vsyncadd %s355, %s360
          %s362 = smul.addr %s32, 128
          %s363 = scalar_lea.hbm %s1, %s362
          %s365 = sshll.u32 %s358, 4
          %s366 = int_to_ptr.vmem [resolvable:$true] %s365
          %368 = dma.hbm_to_vmem [thread:$0]  %s363, 128, %s366, %s355
        $region48: #{tpu_custom_call.1} parent=39 // pred_fallthru
          _
        // Predicated region
        $region49: #{tpu_custom_call.1} parent=39 // pred_check
          %p369 = pneg %p111
        $region50: #{tpu_custom_call.1} parent=39 // pred_check_branch
          %371 = sbr.rel (%p369) target = $region52
        $region51: #{tpu_custom_call.1} parent=39 // pred_region
          %s372 = sand.u32 %s25, 1
          %s373 = scalar_lea.sflag [#allocation6], %s372
          %s374 = sand.u32 %s101, 1
          %s375 = smul.addr %s374, 8
          %s376 = scalar_lea.vmem [#allocation7], %s375
          %s378 = ssub.s32 128, 128
          %379 = vsyncadd %s373, %s378
          %s380 = smul.addr %s32, 128
          %s381 = scalar_lea.hbm %s2, %s380
          %s383 = sshll.u32 %s376, 4
          %s384 = int_to_ptr.vmem [resolvable:$true] %s383
          %386 = dma.hbm_to_vmem [thread:$0]  %s381, 128, %s384, %s373
        $region52: #{tpu_custom_call.1} parent=39 // pred_fallthru
          _
      $region40: #{tpu_custom_call.1} parent=5 // pred_fallthru
        _
      %p387 = scmp.le.s32.totalorder 1, %s25
      %p388 = scmp.lt.s32.totalorder %s25, 3
      %p389 = pnand %p387, %p388
      %p390 = pneg %p389
      // Predicated region
      $region53: #{tpu_custom_call.1} parent=5 // pred_check
        _
      $region54: #{tpu_custom_call.1} parent=5 // pred_check_branch
        %392 = sbr.rel (%p389) target = $region56
      $region55: #{tpu_custom_call.1} parent=5 // pred_region
        %s393 = ssub.s32 %s25, 1
        %s394 = sand.u32 %s52, 1
        %s395 = scalar_lea.sflag [#allocation3], %s394
        %s396 = sand.u32 %s52, 1
        %s397 = smul.addr %s396, 32
        %s398 = scalar_lea.vmem [#allocation2], %s397
        // Predicated region
        $region57: #{tpu_custom_call.1} parent=55 // pred_check
          %p399 = pneg %p65
        $region58: #{tpu_custom_call.1} parent=55 // pred_check_branch
          %401 = sbr.rel (%p399) target = $region60
        $region59: #{tpu_custom_call.1} parent=55 // pred_region
          %402 = dma.done %s395, 512
        $region60: #{tpu_custom_call.1} parent=55 // pred_fallthru
          _
        %s403 = sand.u32 %s30, 1
        %s404 = scalar_lea.sflag [#allocation6], %s403
        %s405 = sand.u32 %s78, 1
        %s406 = smul.addr %s405, 8
        %s407 = scalar_lea.vmem [#allocation5], %s406
        // Predicated region
        $region61: #{tpu_custom_call.1} parent=55 // pred_check
          %p408 = pneg %p91
        $region62: #{tpu_custom_call.1} parent=55 // pred_check_branch
          %410 = sbr.rel (%p408) target = $region64
        $region63: #{tpu_custom_call.1} parent=55 // pred_region
          %411 = dma.done %s404, 128
        $region64: #{tpu_custom_call.1} parent=55 // pred_fallthru
          _
        %s412 = sand.u32 %s30, 1
        %s413 = scalar_lea.sflag [#allocation6], %s412
        %s414 = sand.u32 %s104, 1
        %s415 = smul.addr %s414, 8
        %s416 = scalar_lea.vmem [#allocation7], %s415
        // Predicated region
        $region65: #{tpu_custom_call.1} parent=55 // pred_check
          %p417 = pneg %p117
        $region66: #{tpu_custom_call.1} parent=55 // pred_check_branch
          %419 = sbr.rel (%p417) target = $region68
        $region67: #{tpu_custom_call.1} parent=55 // pred_region
          %420 = dma.done %s413, 128
        $region68: #{tpu_custom_call.1} parent=55 // pred_fallthru
          _
        // Predicated region
        $region69: #{tpu_custom_call.1} parent=55 // pred_check
          %p421 = pneg %p138
        $region70: #{tpu_custom_call.1} parent=55 // pred_check_branch
          %423 = sbr.rel (%p421) target = $region72
        $region71: #{tpu_custom_call.1} parent=55 // pred_region
          %424 = dma.done [#allocation9], 384
        $region72: #{tpu_custom_call.1} parent=55 // pred_fallthru
          _
        // Predicated region
        $region73: #{tpu_custom_call.1} parent=55 // pred_check
          %p425 = pneg %p180
        $region74: #{tpu_custom_call.1} parent=55 // pred_check_branch
          %427 = sbr.rel (%p425) target = $region76
        $region75: #{tpu_custom_call.1} parent=55 // pred_region
          %428 = dma.done [#allocation9], 192
        $region76: #{tpu_custom_call.1} parent=55 // pred_fallthru
          _
        %s429 = sand.u32 %s52, 1
        %s430 = scalar_lea.sflag [#allocation3], %s429
        %s431 = sand.u32 %s52, 1
        %s432 = smul.addr %s431, 32
        %s433 = scalar_lea.vmem [#allocation2], %s432
        %p434 = pneg %p65
        %p435 = pneg %p62
        %s436 = sand.u32 %s30, 1
        %s437 = scalar_lea.sflag [#allocation6], %s436
        %s438 = sand.u32 %s78, 1
        %s439 = smul.addr %s438, 8
        %s440 = scalar_lea.vmem [#allocation5], %s439
        %p441 = pneg %p91
        %p442 = pneg %p88
        %s443 = sand.u32 %s30, 1
        %s444 = scalar_lea.sflag [#allocation6], %s443
        %s445 = sand.u32 %s104, 1
        %s446 = smul.addr %s445, 8
        %s447 = scalar_lea.vmem [#allocation7], %s446
        %p448 = pneg %p117
        %p449 = pneg %p114
        %p450 = pneg %p138
        %p451 = pneg %p135
        %p452 = pneg %p159
        %p453 = pneg %p156
        %p454 = pneg %p180
        %p455 = pneg %p177
        %p456 = pneg %p201
        %p457 = pneg %p198
        %p458 = pneg %p222
        %p459 = pneg %p219
        %p460 = pneg %p243
        %p461 = pneg %p240
        %p462 = pneg %p271
        %p463 = pneg %p268
        %s464 = sand.u32 %s258, 1
        %s465 = scalar_lea.sflag [#allocation4], %s464
        %s466 = sand.u32 %s258, 1
        %s467 = smul.addr %s466, 32
        %s468 = scalar_lea.vmem [#allocation11], %s467
        %s469 = smul.u32 4, %s35
        %s470 = smul.u32 4, %s35
        %v472 = vld [vmem:[%s398] sm:$0xff]
        %v473 = vld [vmem:[%s398 + $0x8] sm:$0xff]
        %v474 = vld [vmem:[%s398 + $0x10] sm:$0xff]
        %v475 = vld [vmem:[%s398 + $0x18] sm:$0xff]
        %v476 = vpack.c.bf16 %v472, %v472
        %v477 = vpack.c.bf16 %v473, %v473
        %v478 = vpack.c.bf16 %v474, %v474
        %v479 = vpack.c.bf16 %v475, %v475
        %v480 = vld [vmem:[#allocation8] sm:$0xf]
        %v481 = vld [vmem:[#allocation8 + $0x4] sm:$0xf]
        %v482 = vld [vmem:[#allocation8 + $0x8] sm:$0xf]
        %v483 = vld [vmem:[#allocation8 + $0xc] sm:$0xf]
        %v484 = vld [vmem:[#allocation8 + $0x10] sm:$0xf]
        %v485 = vld [vmem:[#allocation8 + $0x14] sm:$0x3]
        %v486 = vld [vmem:[%s4] sm:$0x1]
        %v488 = vlaneseq
        %v489 = vshrl.u32 %v488, 7
        %v490 = vsub.s32 0, %v489
        %v491 = vrot.slane %v486, %v490
        %v497 = vunpack.c.l.b16 %v476
        %v498 = vunpack.c.l.b16 %v477
        %v499 = vunpack.c.l.b16 %v478
        %v500 = vunpack.c.l.b16 %v479
        %v501 = vpack.c.b16 %v498, %v497
        %v502 = vpack.c.b16 %v500, %v499
        %v509 = vunpack.c.l.b16 %v480
        %v510 = vunpack.c.l.b16 %v481
        %v511 = vunpack.c.l.b16 %v482
        %v512 = vunpack.c.l.b16 %v483
        %v513 = vunpack.c.l.b16 %v484
        %v514 = vunpack.c.l.b16 %v485
        %v515 = vpack.c.b16 %v510, %v509
        %v516 = vpack.c.b16 %v512, %v511
        %v517 = vpack.c.b16 %v514, %v513
        %vm520 = vcmask 359424
        %v522 = vsel %vm520, %v501, 0
        %v525 = vsel %vm520, %v502, 0
        %vm527 = vcmask 1045504
        %v529 = vsel %vm527, %v517, 0
        %531 = vmatprep.subr.bf16.mxu0 0
        %532 = vmatpush1.bf16.msra.mxu0 0
        %533 = vmatprep.subr.bf16.mxu0 0
        %534 = vmatpush1.bf16.msra.mxu0 0
        %535 = vmatprep.subr.bf16.mxu0 0
        %536 = vmatpush1.bf16.msra.mxu0 0
        %537 = vmatprep.subr.bf16.mxu0 0
        %538 = vmatpush1.bf16.msra.mxu0 0
        %539 = vmatprep.subr.bf16.mxu0 0
        %540 = vmatpush1.bf16.msra.mxu0 0
        %541 = vmatprep.subr.bf16.mxu0 0
        %542 = vmatpush1.bf16.msra.mxu0 %v529
        %543 = vmatprep.subr.bf16.mxu0 0
        %544 = vmatpush1.bf16.msra.mxu0 %v516
        %545 = vmatprep.subr.bf16.mxu0 0
        %546 = vmatpush1.bf16.msra.mxu0 %v515
        %547 = vmatprep.subr.bf16.mxu0 0
        %548 = vmatpush2.bf16.msra.mxu0 0
        %549 = vmatprep.subr.bf16.mxu0 0
        %550 = vmatpush2.bf16.msra.mxu0 0
        %551 = vmatprep.subr.bf16.mxu0 0
        %552 = vmatpush2.bf16.msra.mxu0 0
        %553 = vmatprep.subr.bf16.mxu0 0
        %554 = vmatpush2.bf16.msra.mxu0 0
        %555 = vmatprep.subr.bf16.mxu0 0
        %556 = vmatpush2.bf16.msra.mxu0 0
        %557 = vmatprep.subr.bf16.mxu0 0
        %558 = vmatpush2.bf16.msra.mxu0 0
        %559 = vmatprep.subr.bf16.mxu0 0
        %560 = vmatpush2.bf16.msra.mxu0 0
        %561 = vmatprep.subr.bf16.mxu0 0
        %562 = vmatpush2.bf16.msra.mxu0 0
        %563 = vmatprep.mubr.bf16.mxu0 0
        %564 = vmatmul.mubr.bf16.gmra.mxu0 %v522
        %v565 = vpop.f32.mrf.mxu0
        %v566 = vadd.f32 %v491, %v565
        %v567 = vpop.f32.mrf.mxu0
        %v568 = vpop.f32.mrf.mxu0
        %v569 = vadd.f32 %v491, %v568
        %v570 = vpop.f32.mrf.mxu0
        %571 = vmatprep.mubr.bf16.mxu0 0
        %572 = vmatmul.mubr.bf16.gmra.mxu0 %v525
        %v573 = vpop.f32.mrf.mxu0
        %v574 = vadd.f32 %v491, %v573
        %v575 = vpop.f32.mrf.mxu0
        %v576 = vpop.f32.mrf.mxu0
        %v577 = vadd.f32 %v491, %v576
        %v578 = vpop.f32.mrf.mxu0
        %579 = vdwg.mxu0
        %v580 = vld [vmem:[%s407] sm:$0xff]
        %v581 = vpack.c.bf16 %v580, %v580
        %v582 = vld [vmem:[#allocation10] sm:$0xf]
        %v583 = vld [vmem:[#allocation10 + $0x4] sm:$0xf]
        %v584 = vld [vmem:[#allocation10 + $0x8] sm:$0x7]
        %v585 = vld [vmem:[%s6] sm:$0x1]
        %v587 = vlaneseq
        %v588 = vshrl.u32 %v587, 7
        %v589 = vsub.s32 0, %v588
        %v590 = vrot.slane %v585, %v589
        %v595 = vunpack.c.l.b16 %v582
        %v596 = vunpack.c.l.b16 %v583
        %v597 = vunpack.c.l.b16 %v584
        %v598 = vpack.c.b16 %v596, %v595
        %v599 = vpack.c.b16 %v597, %v597
        %vm601 = vcmask 179200
        %v603 = vsel %vm601, %v581, 0
        %vm605 = vcmask 1042432
        %v607 = vsel %vm605, %v599, 0
        %609 = vmatprep.subr.bf16.mxu0 0
        %610 = vmatpush1.bf16.msra.mxu0 0
        %611 = vmatprep.subr.bf16.mxu0 0
        %612 = vmatpush1.bf16.msra.mxu0 0
        %613 = vmatprep.subr.bf16.mxu0 0
        %614 = vmatpush1.bf16.msra.mxu0 0
        %615 = vmatprep.subr.bf16.mxu0 0
        %616 = vmatpush1.bf16.msra.mxu0 0
        %617 = vmatprep.subr.bf16.mxu0 0
        %618 = vmatpush1.bf16.msra.mxu0 0
        %619 = vmatprep.subr.bf16.mxu0 0
        %620 = vmatpush1.bf16.msra.mxu0 0
        %621 = vmatprep.subr.bf16.mxu0 0
        %622 = vmatpush1.bf16.msra.mxu0 %v607
        %623 = vmatprep.subr.bf16.mxu0 0
        %624 = vmatpush1.bf16.msra.mxu0 %v598
        %625 = vmatprep.subr.bf16.mxu0 0
        %626 = vmatpush2.bf16.msra.mxu0 0
        %627 = vmatprep.subr.bf16.mxu0 0
        %628 = vmatpush2.bf16.msra.mxu0 0
        %629 = vmatprep.subr.bf16.mxu0 0
        %630 = vmatpush2.bf16.msra.mxu0 0
        %631 = vmatprep.subr.bf16.mxu0 0
        %632 = vmatpush2.bf16.msra.mxu0 0
        %633 = vmatprep.subr.bf16.mxu0 0
        %634 = vmatpush2.bf16.msra.mxu0 0
        %635 = vmatprep.subr.bf16.mxu0 0
        %636 = vmatpush2.bf16.msra.mxu0 0
        %637 = vmatprep.subr.bf16.mxu0 0
        %638 = vmatpush2.bf16.msra.mxu0 0
        %639 = vmatprep.subr.bf16.mxu0 0
        %640 = vmatpush2.bf16.msra.mxu0 0
        %641 = vmatprep.mubr.bf16.mxu0 0
        %642 = vmatmul.mubr.bf16.gmra.mxu0 %v603
        %v643 = vpop.f32.mrf.mxu0
        %v644 = vadd.f32 %v590, %v643
        %v645 = vpop.f32.mrf.mxu0
        %v646 = vpop.f32.mrf.mxu0
        %v647 = vpop.f32.mrf.mxu0
        %648 = vdwg.mxu0
        %v649 = vadd.f32 %v566, %v644
        %v650 = vadd.f32 %v569, %v644
        %v651 = vadd.f32 %v574, %v644
        %v652 = vadd.f32 %v577, %v644
        %653 = vst [vmem:[%s468] sm:$0xff] %v649
        %654 = vst [vmem:[%s468 + $0x8] sm:$0xff] %v650
        %655 = vst [vmem:[%s468 + $0x10] sm:$0xff] %v651
        %656 = vst [vmem:[%s468 + $0x18] sm:$0xff] %v652
        %p657 = scmp.eq.s32.totalorder %s35, 0
        // Predicated region
        $region77: #{tpu_custom_call.1} parent=55 // pred_check
          %p658 = pneg %p657
        $region78: #{tpu_custom_call.1} parent=55 // pred_check_branch
          %660 = sbr.rel (%p658) target = $region80
        $region79: #{tpu_custom_call.1} parent=55 // pred_region
          %v661 = vld [vmem:[%s416] sm:$0xff]
          %662 = vadd.xlane.f32.xlu0 %v661
          %v663 = vpop.xlane.xlu0 %662
          %v664 = vrcp.pop 128.0
          %v665 = vmul.f32 %v663, %v664
          %v666 = vsub.f32 %v661, %v665
          %v667 = vmul.f32 %v666, %v666
          %668 = vadd.xlane.f32.xlu0 %v667
          %v669 = vpop.xlane.xlu0 %668
          %v670 = vmul.f32 %v669, %v664
          %v671 = vadd.f32 %v670, 1e-05
          %v672 = vrsqrt.pop %v671
          %v673 = vmul.f32 %v666, %v672
          %v674 = vld [vmem:[%s7] sm:$0x1]
          %v676 = vlaneseq
          %v677 = vshrl.u32 %v676, 7
          %v678 = vsub.s32 0, %v677
          %v679 = vrot.slane %v674, %v678
          %v681 = vmul.f32 %v673, %v679
          %v682 = vld [vmem:[%s8] sm:$0x1]
          %v684 = vlaneseq
          %v685 = vshrl.u32 %v684, 7
          %v686 = vsub.s32 0, %v685
          %v687 = vrot.slane %v682, %v686
          %v689 = vadd.f32 %v681, %v687
          %v690 = vld [vmem:[%s468] sm:$0xff]
          %v691 = vadd.f32 %v690, %v689
          %692 = vst [vmem:[%s468] sm:$0xff] %v691
        $region80: #{tpu_custom_call.1} parent=55 // pred_fallthru
          _
        %s693 = sand.u32 %s258, 1
        %s694 = scalar_lea.sflag [#allocation4], %s693
        %s695 = sand.u32 %s258, 1
        %s696 = smul.addr %s695, 32
        %s697 = scalar_lea.vmem [#allocation11], %s696
        // Predicated region
        $region81: #{tpu_custom_call.1} parent=55 // pred_check
          %p698 = pneg %p268
        $region82: #{tpu_custom_call.1} parent=55 // pred_check_branch
          %700 = sbr.rel (%p698) target = $region84
        $region83: #{tpu_custom_call.1} parent=55 // pred_region
          %s701 = smul.u32 4, %s35
          %s703 = ssub.s32 512, 512
          %704 = vsyncadd %s694, %s703
          %s705 = smul.addr %s34, 4
          %s706 = sadd.s32 %s701, %s705
          %s707 = smul.addr %s706, 128
          %s708 = scalar_lea.hbm %s9, %s707
          %s709 = sshll.u32 %s697, 4
          %s710 = int_to_ptr.vmem [resolvable:$true] %s709
          %715 = dma.vmem_to_hbm [thread:$0]  %s710, 512, %s708, %s694, 128, 128, 8
        $region84: #{tpu_custom_call.1} parent=55 // pred_fallthru
          _
      $region56: #{tpu_custom_call.1} parent=5 // pred_fallthru
        _
      %p716 = scmp.le.s32.totalorder 2, %s25
      // Predicated region
      $region85: #{tpu_custom_call.1} parent=5 // pred_check
        %p717 = pneg %p716
      $region86: #{tpu_custom_call.1} parent=5 // pred_check_branch
        %719 = sbr.rel (%p717) target = $region88
      $region87: #{tpu_custom_call.1} parent=5 // pred_region
        %s720 = ssub.s32 %s25, 2
        // Predicated region
        $region89: #{tpu_custom_call.1} parent=87 // pred_check
          %p721 = pneg %p274
        $region90: #{tpu_custom_call.1} parent=87 // pred_check_branch
          %723 = sbr.rel (%p721) target = $region92
        $region91: #{tpu_custom_call.1} parent=87 // pred_region
          %s724 = sand.u32 %s259, 1
          %s725 = scalar_lea.sflag [#allocation4], %s724
          %s726 = sand.u32 %s259, 1
          %s727 = smul.addr %s726, 32
          %s728 = scalar_lea.vmem [#allocation11], %s727
          %729 = dma.done %s725, 512
        $region92: #{tpu_custom_call.1} parent=87 // pred_fallthru
          _
      $region88: #{tpu_custom_call.1} parent=5 // pred_fallthru
        _
    $region6: #{tpu_custom_call.1} parent=1 // loop_footer
      %s29 = sadd.s32 1, %s25
    $region7: #{tpu_custom_call.1} parent=1 // loop_footer_branch
      %24 = sbr.rel target = $region3
    $region8: #{tpu_custom_call.1} parent=1 // loop_exit
      _
    %730 = vsyncpa [#allocation3], 1
    %s731 = scalar_lea.sflag [#allocation3], 1
    %732 = vsyncpa %s731, 1
    %733 = vsyncpa [#allocation6], 1
    %s734 = scalar_lea.sflag [#allocation6], 1
    %735 = vsyncpa %s734, 1
    %736 = vsyncpa [#allocation9], 1
    %737 = vsyncpa [#allocation4], 1
    %s738 = scalar_lea.sflag [#allocation4], 1
    %739 = vsyncpa %s738, 1

</llo_original>
